<compile_context>
chip_gen: v5e
topology: v5e:2x2
jax: 0.10.0
libtpu: 0.0.40
codegen_flags: <defaults>
</compile_context>

<pallas_src>
import jax
import jax.numpy as jnp
import numpy as np
from jax.experimental import pallas as pl
from jax.experimental.pallas import tpu as pltpu


def _round_up(x, m):
    return ((x + m - 1) // m) * m


def transh_kernel(h_ref, r_ref, t_ref, n_ref, out_ref):
    """Per-tile TransH scoring in native (TB, D) layout.

    h_ref, r_ref, t_ref, n_ref : (TB, D) — head/relation/tail embeddings and
                                 relation hyperplane normals (f32 or bf16).
    out_ref                    : (TB, 1) f32 — L2 distance scores.
    """
    h = h_ref[...].astype(jnp.float32)
    r = r_ref[...].astype(jnp.float32)
    t = t_ref[...].astype(jnp.float32)
    n = n_ref[...].astype(jnp.float32)

    # normalize hyperplane normal:  w = n * rsqrt(sum(n*n))      (EUP rsqrt)
    inv_norm = jax.lax.rsqrt(jnp.sum(n * n, axis=-1, keepdims=True))  # (TB, 1)
    w = n * inv_norm

    # projection is linear, so project (h - t) once:
    #   h_proj + r - t_proj = (h - t) - ((h - t) . w) w + r
    e = h - t
    d = e - jnp.sum(e * w, axis=-1, keepdims=True) * w + r

    out_ref[...] = jnp.sqrt(jnp.sum(d * d, axis=-1, keepdims=True))   # (TB, 1)


def _choose_tile(batch, dim, itemsize, desired=8192):
    """Pick a batch tile TB (multiple of 128) balancing VMEM use and padding."""
    tb = min(desired, _round_up(batch, 128))
    # Keep each (TB, D) input block <= ~2 MiB so 4 inputs x 2 pipeline buffers
    # stay far below the scoped-VMEM ceiling on every chip (v5e default 16 MiB,
    # v7x physical 64 MiB).
    max_tb = max(128, ((2 << 20) // max(1, dim * itemsize)) // 128 * 128)
    tb = min(tb, max_tb)
    # Bound batch-padding waste for awkward batch sizes.
    while tb > 128 and _round_up(batch, tb) - batch > max(batch // 8, 256):
        tb //= 2
    return tb


def _transh_score_padded(h, r, t, n, tb, core_parallel=False):
    """h/r/t/n: (Bp, D) with Bp % tb == 0 -> scores (Bp, 1) f32."""
    Bp, D = h.shape
    itemsize = jnp.dtype(h.dtype).itemsize
    grid = (Bp // tb,)

    # Explicit scoped-VMEM limit: 4 inputs x 2 buffers x (tb, D) blocks plus the
    # (tb, 1) f32 output, with generous headroom.
    needed = 2 * (4 * tb * D * itemsize + tb * 4)
    vmem_limit = int(min(48 << 20, max(32 << 20, 2 * needed)))

    # "parallel" on the batch axis; on v7x flip core_parallel=True to shard
    # tiles across both TensorCores.
    semantics = (pltpu.CORE_PARALLEL,) if core_parallel else ("parallel",)

    in_spec = pl.BlockSpec((tb, D), lambda i: (i, 0))
    return pl.pallas_call(
        transh_kernel,
        out_shape=jax.ShapeDtypeStruct((Bp, 1), jnp.float32),
        grid_spec=pl.GridSpec(
            grid=grid,
            in_specs=[in_spec, in_spec, in_spec, in_spec],
            out_specs=pl.BlockSpec((tb, 1), lambda i: (i, 0)),
        ),
        compiler_params=pltpu.CompilerParams(
            dimension_semantics=semantics,
            vmem_limit_bytes=vmem_limit,
        ),
    )(h, r, t, n)


class TransHParams:
    """Deterministic parameter container mirroring the PyTorch module __init__."""

    def __init__(self, num_entities, num_relations, embedding_dim, key):
        bound = 6.0 / np.sqrt(embedding_dim)
        k1, k2, k3 = jax.random.split(key, 3)
        self.entity_embeddings = jax.random.uniform(
            k1, (num_entities, embedding_dim), jnp.float32, -bound, bound)
        self.relation_embeddings = jax.random.uniform(
            k2, (num_relations, embedding_dim), jnp.float32, -bound, bound)
        self.relation_norms = jax.random.uniform(
            k3, (num_relations, embedding_dim), jnp.float32, -bound, bound)
        self.embedding_dim = embedding_dim


def transh_forward(params, head, relation, tail, *, stream_dtype=jnp.float32,
                   tb=None, core_parallel=False):
    """Full forward: pad indices, gather embeddings (glue), Pallas scoring kernel.

    stream_dtype: dtype used for the gathered (B, D) intermediates in HBM
                  (jnp.bfloat16 halves HBM traffic; compute stays f32 in-kernel).
    """
    head = jnp.asarray(head, jnp.int32)
    relation = jnp.asarray(relation, jnp.int32)
    tail = jnp.asarray(tail, jnp.int32)

    B = head.shape[0]
    D = params.embedding_dim
    if tb is None:
        tb = _choose_tile(B, D, jnp.dtype(stream_dtype).itemsize)
    Bp = _round_up(B, tb)
    pad = Bp - B
    if pad:
        # Pad the cheap int32 index vectors (index 0 gathers a real row, so the
        # kernel never sees an all-zero normal), not the (B, D) embeddings.
        head = jnp.pad(head, (0, pad))
        relation = jnp.pad(relation, (0, pad))
        tail = jnp.pad(tail, (0, pad))

    h = jnp.take(params.entity_embeddings, head, axis=0).astype(stream_dtype)
    r = jnp.take(params.relation_embeddings, relation, axis=0).astype(stream_dtype)
    t = jnp.take(params.entity_embeddings, tail, axis=0).astype(stream_dtype)
    n = jnp.take(params.relation_norms, relation, axis=0).astype(stream_dtype)

    out = _transh_score_padded(h, r, t, n, tb, core_parallel=core_parallel)
    return out[:B, 0]


def transh_reference(params, head, relation, tail):
    """Pure-JAX reference matching the PyTorch semantics."""
    h = jnp.take(params.entity_embeddings, head, axis=0)
    r = jnp.take(params.relation_embeddings, relation, axis=0)
    t = jnp.take(params.entity_embeddings, tail, axis=0)
    n = jnp.take(params.relation_norms, relation, axis=0)
    w = n / jnp.linalg.norm(n, axis=1, keepdims=True)
    h_p = h - jnp.sum(h * w, axis=1, keepdims=True) * w
    t_p = t - jnp.sum(t * w, axis=1, keepdims=True) * w
    return jnp.linalg.norm(h_p + r - t_p, axis=1)


if __name__ == "__main__":
    num_entities = 100
    num_relations = 20
    embedding_dim = 32
    batch = 8

    key = jax.random.PRNGKey(0)
    pkey, hkey, rkey, tkey = jax.random.split(key, 4)

    params = TransHParams(num_entities, num_relations, embedding_dim, pkey)

    head = jax.random.randint(hkey, (batch,), 0, num_entities, dtype=jnp.int32)
    relation = jax.random.randint(rkey, (batch,), 0, num_relations, dtype=jnp.int32)
    tail = jax.random.randint(tkey, (batch,), 0, num_entities, dtype=jnp.int32)

    ref = transh_reference(params, head, relation, tail)

    # f32 streaming path: must match the PyTorch/JAX reference tightly.
    scores = transh_forward(params, head, relation, tail)
    jax.block_until_ready(scores)
    np.testing.assert_allclose(np.asarray(scores), np.asarray(ref),
                               rtol=1e-5, atol=1e-5)

    # bf16 streaming path (halved HBM bytes, f32 compute in-kernel): loose check.
    scores_bf16 = transh_forward(params, head, relation, tail,
                                 stream_dtype=jnp.bfloat16)
    jax.block_until_ready(scores_bf16)
    np.testing.assert_allclose(np.asarray(scores_bf16), np.asarray(ref),
                               rtol=5e-2, atol=5e-2)

    print("KERNEL_OK")
</pallas_src>

<mosaic_0001>
module attributes {stable_mosaic.version = 11 : i64} {
  func.func @transh_kernel(%arg0: i32, %arg1: memref<128x32xf32, #tpu.memory_space<vmem>>, %arg2: memref<128x32xf32, #tpu.memory_space<vmem>>, %arg3: memref<128x32xf32, #tpu.memory_space<vmem>>, %arg4: memref<128x32xf32, #tpu.memory_space<vmem>>, %arg5: memref<128x1xf32, #tpu.memory_space<vmem>>) attributes {dimension_semantics = [#tpu.dimension_semantics<parallel>], iteration_bounds = array<i64: 1>, scalar_prefetch = 0 : i64, scratch_operands = 0 : i64, tpu.core_type = #tpu.core_type<tc>, window_params = [{transform_indices = @transform_0, window_bounds = array<i64: 128, 32>}, {transform_indices = @transform_1, window_bounds = array<i64: 128, 32>}, {transform_indices = @transform_2, window_bounds = array<i64: 128, 32>}, {transform_indices = @transform_3, window_bounds = array<i64: 128, 32>}, {transform_indices = @transform_4, window_bounds = array<i64: 128, 1>}]} {
    %c0 = arith.constant 0 : index
    %c0_0 = arith.constant 0 : index
    %0 = vector.load %arg1[%c0, %c0_0] : memref<128x32xf32, #tpu.memory_space<vmem>>, vector<128x32xf32>
    %c0_1 = arith.constant 0 : index
    %c0_2 = arith.constant 0 : index
    %1 = vector.load %arg2[%c0_1, %c0_2] : memref<128x32xf32, #tpu.memory_space<vmem>>, vector<128x32xf32>
    %c0_3 = arith.constant 0 : index
    %c0_4 = arith.constant 0 : index
    %2 = vector.load %arg3[%c0_3, %c0_4] : memref<128x32xf32, #tpu.memory_space<vmem>>, vector<128x32xf32>
    %c0_5 = arith.constant 0 : index
    %c0_6 = arith.constant 0 : index
    %3 = vector.load %arg4[%c0_5, %c0_6] : memref<128x32xf32, #tpu.memory_space<vmem>>, vector<128x32xf32>
    %4 = arith.mulf %3, %3 : vector<128x32xf32>
    %cst = arith.constant dense<0.000000e+00> : vector<128xf32>
    %5 = vector.multi_reduction <add>, %4, %cst [1] : vector<128x32xf32> to vector<128xf32>
    %6 = vector.shape_cast %5 : vector<128xf32> to vector<128x1xf32>
    %7 = math.rsqrt %6 : vector<128x1xf32>
    %8 = vector.broadcast %7 : vector<128x1xf32> to vector<128x32xf32>
    %9 = arith.mulf %3, %8 : vector<128x32xf32>
    %10 = arith.subf %0, %2 : vector<128x32xf32>
    %11 = arith.mulf %10, %9 : vector<128x32xf32>
    %cst_7 = arith.constant dense<0.000000e+00> : vector<128xf32>
    %12 = vector.multi_reduction <add>, %11, %cst_7 [1] : vector<128x32xf32> to vector<128xf32>
    %13 = vector.shape_cast %12 : vector<128xf32> to vector<128x1xf32>
    %14 = vector.broadcast %13 : vector<128x1xf32> to vector<128x32xf32>
    %15 = arith.mulf %14, %9 : vector<128x32xf32>
    %16 = arith.subf %10, %15 : vector<128x32xf32>
    %17 = arith.addf %16, %1 : vector<128x32xf32>
    %18 = arith.mulf %17, %17 : vector<128x32xf32>
    %cst_8 = arith.constant dense<0.000000e+00> : vector<128xf32>
    %19 = vector.multi_reduction <add>, %18, %cst_8 [1] : vector<128x32xf32> to vector<128xf32>
    %20 = vector.shape_cast %19 : vector<128xf32> to vector<128x1xf32>
    %21 = math.sqrt %20 : vector<128x1xf32>
    %c0_9 = arith.constant 0 : index
    %c0_10 = arith.constant 0 : index
    %22 = vector.load %arg5[%c0_9, %c0_10] : memref<128x1xf32, #tpu.memory_space<vmem>>, vector<128x1xf32>
    tpu.vector_store %arg5[%c0_9, %c0_10], %21 {strides = array<i32>} : memref<128x1xf32, #tpu.memory_space<vmem>>, vector<128x1xf32>,
    return
  }
  func.func @transform_0(%arg0: i32) -> (i32, i32) {
    %c0_i32 = arith.constant 0 : i32
    %c0_i32_0 = arith.constant 0 : i32
    return %arg0, %c0_i32 : i32, i32
  }
  func.func @transform_1(%arg0: i32) -> (i32, i32) {
    %c0_i32 = arith.constant 0 : i32
    %c0_i32_0 = arith.constant 0 : i32
    return %arg0, %c0_i32 : i32, i32
  }
  func.func @transform_2(%arg0: i32) -> (i32, i32) {
    %c0_i32 = arith.constant 0 : i32
    %c0_i32_0 = arith.constant 0 : i32
    return %arg0, %c0_i32 : i32, i32
  }
  func.func @transform_3(%arg0: i32) -> (i32, i32) {
    %c0_i32 = arith.constant 0 : i32
    %c0_i32_0 = arith.constant 0 : i32
    return %arg0, %c0_i32 : i32, i32
  }
  func.func @transform_4(%arg0: i32) -> (i32, i32) {
    %c0_i32 = arith.constant 0 : i32
    %c0_i32_0 = arith.constant 0 : i32
    return %arg0, %c0_i32 : i32, i32
  }
}

</mosaic_0001>

<llo_original>
// kernel: tpu_custom_call.1
$region0: #{tpu_custom_call.1}
  #allocation0 [shape = 'u32[]', space=smem, size = 0x4, offset = 0x4, fixed_abs, tag = 'smem constant byte address 0x4 - core index']
  #allocation1 [shape = 'u32[72,128]{1,0:T(1,128)}', space=vmem, size = 0x9000, scoped, tag = 'internal scratch']
  %s0 = inlined_call_operand.vmem [shape: f32[128,32], index: 0, kind: input, shape index: {}]
  %s1 = inlined_call_operand.vmem [shape: f32[128,32], index: 1, kind: input, shape index: {}]
  %s2 = inlined_call_operand.vmem [shape: f32[128,32], index: 2, kind: input, shape index: {}]
  %s3 = inlined_call_operand.vmem [shape: f32[128,32], index: 3, kind: input, shape index: {}]
  %s4 = inlined_call_operand.vmem [shape: f32[128,1], index: 4, kind: output, shape index: {}]
  %s5 = sld [smem:[#allocation0]]
  $region26: #{tpu_custom_call.1} parent=0
    _
  %s7 = ssub.s32 1, %s5
  %s8 = scalar_select 0, %s7, %s5
  // Predicated region
  $region2: #{tpu_custom_call.1} parent=0 // pred_check
    _
  $region3: #{tpu_custom_call.1} parent=0 // pred_check_branch
    %10 = sbr.rel (0) target = $region5
  $region4: #{tpu_custom_call.1} parent=0 // pred_region
    _
  $region5: #{tpu_custom_call.1} parent=0 // pred_fallthru
    _
  // Predicated region
  $region6: #{tpu_custom_call.1} parent=0 // pred_check
    _
  $region7: #{tpu_custom_call.1} parent=0 // pred_check_branch
    %12 = sbr.rel (0) target = $region9
  $region8: #{tpu_custom_call.1} parent=0 // pred_region
    _
  $region9: #{tpu_custom_call.1} parent=0 // pred_fallthru
    _
  // Predicated region
  $region10: #{tpu_custom_call.1} parent=0 // pred_check
    _
  $region11: #{tpu_custom_call.1} parent=0 // pred_check_branch
    %14 = sbr.rel (0) target = $region13
  $region12: #{tpu_custom_call.1} parent=0 // pred_region
    _
  $region13: #{tpu_custom_call.1} parent=0 // pred_fallthru
    _
  // Predicated region
  $region14: #{tpu_custom_call.1} parent=0 // pred_check
    _
  $region15: #{tpu_custom_call.1} parent=0 // pred_check_branch
    %16 = sbr.rel (0) target = $region17
  $region16: #{tpu_custom_call.1} parent=0 // pred_region
    _
  $region17: #{tpu_custom_call.1} parent=0 // pred_fallthru
    _
  %v17 = vld [vmem:[%s0] sm:$0xff]
  %v18 = vld [vmem:[%s0 + $0x8] sm:$0xff]
  %v19 = vld [vmem:[%s0 + $0x10] sm:$0xff]
  %v20 = vld [vmem:[%s0 + $0x18] sm:$0xff]
  %v21 = vld [vmem:[%s0 + $0x20] sm:$0xff]
  %v22 = vld [vmem:[%s0 + $0x28] sm:$0xff]
  %v23 = vld [vmem:[%s0 + $0x30] sm:$0xff]
  %v24 = vld [vmem:[%s0 + $0x38] sm:$0xff]
  %v25 = vld [vmem:[%s0 + $0x40] sm:$0xff]
  %v26 = vld [vmem:[%s0 + $0x48] sm:$0xff]
  %v27 = vld [vmem:[%s0 + $0x50] sm:$0xff]
  %v28 = vld [vmem:[%s0 + $0x58] sm:$0xff]
  %v29 = vld [vmem:[%s0 + $0x60] sm:$0xff]
  %v30 = vld [vmem:[%s0 + $0x68] sm:$0xff]
  %v31 = vld [vmem:[%s0 + $0x70] sm:$0xff]
  %v32 = vld [vmem:[%s0 + $0x78] sm:$0xff]
  %v33 = vld [vmem:[%s1] sm:$0xff]
  %v34 = vld [vmem:[%s1 + $0x8] sm:$0xff]
  %v35 = vld [vmem:[%s1 + $0x10] sm:$0xff]
  %v36 = vld [vmem:[%s1 + $0x18] sm:$0xff]
  %v37 = vld [vmem:[%s1 + $0x20] sm:$0xff]
  %v38 = vld [vmem:[%s1 + $0x28] sm:$0xff]
  %v39 = vld [vmem:[%s1 + $0x30] sm:$0xff]
  %v40 = vld [vmem:[%s1 + $0x38] sm:$0xff]
  %v41 = vld [vmem:[%s1 + $0x40] sm:$0xff]
  %v42 = vld [vmem:[%s1 + $0x48] sm:$0xff]
  %v43 = vld [vmem:[%s1 + $0x50] sm:$0xff]
  %v44 = vld [vmem:[%s1 + $0x58] sm:$0xff]
  %v45 = vld [vmem:[%s1 + $0x60] sm:$0xff]
  %v46 = vld [vmem:[%s1 + $0x68] sm:$0xff]
  %v47 = vld [vmem:[%s1 + $0x70] sm:$0xff]
  %v48 = vld [vmem:[%s1 + $0x78] sm:$0xff]
  %v49 = vld [vmem:[%s2] sm:$0xff]
  %v50 = vld [vmem:[%s2 + $0x8] sm:$0xff]
  %v51 = vld [vmem:[%s2 + $0x10] sm:$0xff]
  %v52 = vld [vmem:[%s2 + $0x18] sm:$0xff]
  %v53 = vld [vmem:[%s2 + $0x20] sm:$0xff]
  %v54 = vld [vmem:[%s2 + $0x28] sm:$0xff]
  %v55 = vld [vmem:[%s2 + $0x30] sm:$0xff]
  %v56 = vld [vmem:[%s2 + $0x38] sm:$0xff]
  %v57 = vld [vmem:[%s2 + $0x40] sm:$0xff]
  %v58 = vld [vmem:[%s2 + $0x48] sm:$0xff]
  %v59 = vld [vmem:[%s2 + $0x50] sm:$0xff]
  %v60 = vld [vmem:[%s2 + $0x58] sm:$0xff]
  %v61 = vld [vmem:[%s2 + $0x60] sm:$0xff]
  %v62 = vld [vmem:[%s2 + $0x68] sm:$0xff]
  %v63 = vld [vmem:[%s2 + $0x70] sm:$0xff]
  %v64 = vld [vmem:[%s2 + $0x78] sm:$0xff]
  %v65 = vld [vmem:[%s3] sm:$0xff]
  %v66 = vld [vmem:[%s3 + $0x8] sm:$0xff]
  %v67 = vld [vmem:[%s3 + $0x10] sm:$0xff]
  %v68 = vld [vmem:[%s3 + $0x18] sm:$0xff]
  %v69 = vld [vmem:[%s3 + $0x20] sm:$0xff]
  %v70 = vld [vmem:[%s3 + $0x28] sm:$0xff]
  %v71 = vld [vmem:[%s3 + $0x30] sm:$0xff]
  %v72 = vld [vmem:[%s3 + $0x38] sm:$0xff]
  %v73 = vld [vmem:[%s3 + $0x40] sm:$0xff]
  %v74 = vld [vmem:[%s3 + $0x48] sm:$0xff]
  %v75 = vld [vmem:[%s3 + $0x50] sm:$0xff]
  %v76 = vld [vmem:[%s3 + $0x58] sm:$0xff]
  %v77 = vld [vmem:[%s3 + $0x60] sm:$0xff]
  %v78 = vld [vmem:[%s3 + $0x68] sm:$0xff]
  %v79 = vld [vmem:[%s3 + $0x70] sm:$0xff]
  %v80 = vld [vmem:[%s3 + $0x78] sm:$0xff]
  %v81 = vmul.f32 %v65, %v65
  %v82 = vmul.f32 %v66, %v66
  %v83 = vmul.f32 %v67, %v67
  %v84 = vmul.f32 %v68, %v68
  %v85 = vmul.f32 %v69, %v69
  %v86 = vmul.f32 %v70, %v70
  %v87 = vmul.f32 %v71, %v71
  %v88 = vmul.f32 %v72, %v72
  %v89 = vmul.f32 %v73, %v73
  %v90 = vmul.f32 %v74, %v74
  %v91 = vmul.f32 %v75, %v75
  %v92 = vmul.f32 %v76, %v76
  %v93 = vmul.f32 %v77, %v77
  %v94 = vmul.f32 %v78, %v78
  %v95 = vmul.f32 %v79, %v79
  %v96 = vmul.f32 %v80, %v80
  %vm97 = vcmask 261120
  %v98 = vsel %vm97, %v81, 0.0
  %99 = vadd.xlane.f32.xlu0 %v98
  %v100 = vpop.xlane.xlu0 %99
  %v101 = vsel %vm97, %v82, 0.0
  %102 = vadd.xlane.f32.xlu0 %v101
  %v103 = vpop.xlane.xlu0 %102
  %v104 = vsel %vm97, %v83, 0.0
  %105 = vadd.xlane.f32.xlu0 %v104
  %v106 = vpop.xlane.xlu0 %105
  %v107 = vsel %vm97, %v84, 0.0
  %108 = vadd.xlane.f32.xlu0 %v107
  %v109 = vpop.xlane.xlu0 %108
  %v110 = vsel %vm97, %v85, 0.0
  %111 = vadd.xlane.f32.xlu0 %v110
  %v112 = vpop.xlane.xlu0 %111
  %v113 = vsel %vm97, %v86, 0.0
  %114 = vadd.xlane.f32.xlu0 %v113
  %v115 = vpop.xlane.xlu0 %114
  %v116 = vsel %vm97, %v87, 0.0
  %117 = vadd.xlane.f32.xlu0 %v116
  %v118 = vpop.xlane.xlu0 %117
  %v119 = vsel %vm97, %v88, 0.0
  %120 = vadd.xlane.f32.xlu0 %v119
  %v121 = vpop.xlane.xlu0 %120
  %v122 = vsel %vm97, %v89, 0.0
  %123 = vadd.xlane.f32.xlu0 %v122
  %v124 = vpop.xlane.xlu0 %123
  %v125 = vsel %vm97, %v90, 0.0
  %126 = vadd.xlane.f32.xlu0 %v125
  %v127 = vpop.xlane.xlu0 %126
  %v128 = vsel %vm97, %v91, 0.0
  %129 = vadd.xlane.f32.xlu0 %v128
  %v130 = vpop.xlane.xlu0 %129
  %v131 = vsel %vm97, %v92, 0.0
  %132 = vadd.xlane.f32.xlu0 %v131
  %v133 = vpop.xlane.xlu0 %132
  %v134 = vsel %vm97, %v93, 0.0
  %135 = vadd.xlane.f32.xlu0 %v134
  %v136 = vpop.xlane.xlu0 %135
  %v137 = vsel %vm97, %v94, 0.0
  %138 = vadd.xlane.f32.xlu0 %v137
  %v139 = vpop.xlane.xlu0 %138
  %v140 = vsel %vm97, %v95, 0.0
  %141 = vadd.xlane.f32.xlu0 %v140
  %v142 = vpop.xlane.xlu0 %141
  %v143 = vsel %vm97, %v96, 0.0
  %144 = vadd.xlane.f32.xlu0 %v143
  %v145 = vpop.xlane.xlu0 %144
  %v146 = vrsqrt.pop %v100
  %v147 = vmul.f32 %v146, %v100
  %v148 = vmul.f32 %v147, %v146
  %v149 = vmul.f32 0.5, %v148
  %v150 = vsub.f32 1.5, %v149
  %v151 = vmul.f32 %v146, %v150
  %vm152 = vweird.f32 %v100
  %vm153 = vweird.f32 %v146
  %vm154 = vmor %vm152, %vm153
  %v155 = vsel %vm154, %v146, %v151
  %v156 = vrsqrt.pop %v103
  %v157 = vmul.f32 %v156, %v103
  %v158 = vmul.f32 %v157, %v156
  %v159 = vmul.f32 0.5, %v158
  %v160 = vsub.f32 1.5, %v159
  %v161 = vmul.f32 %v156, %v160
  %vm162 = vweird.f32 %v103
  %vm163 = vweird.f32 %v156
  %vm164 = vmor %vm162, %vm163
  %v165 = vsel %vm164, %v156, %v161
  %v166 = vrsqrt.pop %v106
  %v167 = vmul.f32 %v166, %v106
  %v168 = vmul.f32 %v167, %v166
  %v169 = vmul.f32 0.5, %v168
  %v170 = vsub.f32 1.5, %v169
  %v171 = vmul.f32 %v166, %v170
  %vm172 = vweird.f32 %v106
  %vm173 = vweird.f32 %v166
  %vm174 = vmor %vm172, %vm173
  %v175 = vsel %vm174, %v166, %v171
  %v176 = vrsqrt.pop %v109
  %v177 = vmul.f32 %v176, %v109
  %v178 = vmul.f32 %v177, %v176
  %v179 = vmul.f32 0.5, %v178
  %v180 = vsub.f32 1.5, %v179
  %v181 = vmul.f32 %v176, %v180
  %vm182 = vweird.f32 %v109
  %vm183 = vweird.f32 %v176
  %vm184 = vmor %vm182, %vm183
  %v185 = vsel %vm184, %v176, %v181
  %v186 = vrsqrt.pop %v112
  %v187 = vmul.f32 %v186, %v112
  %v188 = vmul.f32 %v187, %v186
  %v189 = vmul.f32 0.5, %v188
  %v190 = vsub.f32 1.5, %v189
  %v191 = vmul.f32 %v186, %v190
  %vm192 = vweird.f32 %v112
  %vm193 = vweird.f32 %v186
  %vm194 = vmor %vm192, %vm193
  %v195 = vsel %vm194, %v186, %v191
  %v196 = vrsqrt.pop %v115
  %v197 = vmul.f32 %v196, %v115
  %v198 = vmul.f32 %v197, %v196
  %v199 = vmul.f32 0.5, %v198
  %v200 = vsub.f32 1.5, %v199
  %v201 = vmul.f32 %v196, %v200
  %vm202 = vweird.f32 %v115
  %vm203 = vweird.f32 %v196
  %vm204 = vmor %vm202, %vm203
  %v205 = vsel %vm204, %v196, %v201
  %v206 = vrsqrt.pop %v118
  %v207 = vmul.f32 %v206, %v118
  %v208 = vmul.f32 %v207, %v206
  %v209 = vmul.f32 0.5, %v208
  %v210 = vsub.f32 1.5, %v209
  %v211 = vmul.f32 %v206, %v210
  %vm212 = vweird.f32 %v118
  %vm213 = vweird.f32 %v206
  %vm214 = vmor %vm212, %vm213
  %v215 = vsel %vm214, %v206, %v211
  %v216 = vrsqrt.pop %v121
  %v217 = vmul.f32 %v216, %v121
  %v218 = vmul.f32 %v217, %v216
  %v219 = vmul.f32 0.5, %v218
  %v220 = vsub.f32 1.5, %v219
  %v221 = vmul.f32 %v216, %v220
  %vm222 = vweird.f32 %v121
  %vm223 = vweird.f32 %v216
  %vm224 = vmor %vm222, %vm223
  %v225 = vsel %vm224, %v216, %v221
  %v226 = vrsqrt.pop %v124
  %v227 = vmul.f32 %v226, %v124
  %v228 = vmul.f32 %v227, %v226
  %v229 = vmul.f32 0.5, %v228
  %v230 = vsub.f32 1.5, %v229
  %v231 = vmul.f32 %v226, %v230
  %vm232 = vweird.f32 %v124
  %vm233 = vweird.f32 %v226
  %vm234 = vmor %vm232, %vm233
  %v235 = vsel %vm234, %v226, %v231
  %v236 = vrsqrt.pop %v127
  %v237 = vmul.f32 %v236, %v127
  %v238 = vmul.f32 %v237, %v236
  %v239 = vmul.f32 0.5, %v238
  %v240 = vsub.f32 1.5, %v239
  %v241 = vmul.f32 %v236, %v240
  %vm242 = vweird.f32 %v127
  %vm243 = vweird.f32 %v236
  %vm244 = vmor %vm242, %vm243
  %v245 = vsel %vm244, %v236, %v241
  %v246 = vrsqrt.pop %v130
  %v247 = vmul.f32 %v246, %v130
  %v248 = vmul.f32 %v247, %v246
  %v249 = vmul.f32 0.5, %v248
  %v250 = vsub.f32 1.5, %v249
  %v251 = vmul.f32 %v246, %v250
  %vm252 = vweird.f32 %v130
  %vm253 = vweird.f32 %v246
  %vm254 = vmor %vm252, %vm253
  %v255 = vsel %vm254, %v246, %v251
  %v256 = vrsqrt.pop %v133
  %v257 = vmul.f32 %v256, %v133
  %v258 = vmul.f32 %v257, %v256
  %v259 = vmul.f32 0.5, %v258
  %v260 = vsub.f32 1.5, %v259
  %v261 = vmul.f32 %v256, %v260
  %vm262 = vweird.f32 %v133
  %vm263 = vweird.f32 %v256
  %vm264 = vmor %vm262, %vm263
  %v265 = vsel %vm264, %v256, %v261
  %v266 = vrsqrt.pop %v136
  %v267 = vmul.f32 %v266, %v136
  %v268 = vmul.f32 %v267, %v266
  %v269 = vmul.f32 0.5, %v268
  %v270 = vsub.f32 1.5, %v269
  %v271 = vmul.f32 %v266, %v270
  %vm272 = vweird.f32 %v136
  %vm273 = vweird.f32 %v266
  %vm274 = vmor %vm272, %vm273
  %v275 = vsel %vm274, %v266, %v271
  %v276 = vrsqrt.pop %v139
  %v277 = vmul.f32 %v276, %v139
  %v278 = vmul.f32 %v277, %v276
  %v279 = vmul.f32 0.5, %v278
  %v280 = vsub.f32 1.5, %v279
  %v281 = vmul.f32 %v276, %v280
  %vm282 = vweird.f32 %v139
  %vm283 = vweird.f32 %v276
  %vm284 = vmor %vm282, %vm283
  %v285 = vsel %vm284, %v276, %v281
  %v286 = vrsqrt.pop %v142
  %v287 = vmul.f32 %v286, %v142
  %v288 = vmul.f32 %v287, %v286
  %v289 = vmul.f32 0.5, %v288
  %v290 = vsub.f32 1.5, %v289
  %v291 = vmul.f32 %v286, %v290
  %vm292 = vweird.f32 %v142
  %vm293 = vweird.f32 %v286
  %vm294 = vmor %vm292, %vm293
  %v295 = vsel %vm294, %v286, %v291
  %v296 = vrsqrt.pop %v145
  %v297 = vmul.f32 %v296, %v145
  %v298 = vmul.f32 %v297, %v296
  %v299 = vmul.f32 0.5, %v298
  %v300 = vsub.f32 1.5, %v299
  %v301 = vmul.f32 %v296, %v300
  %vm302 = vweird.f32 %v145
  %vm303 = vweird.f32 %v296
  %vm304 = vmor %vm302, %vm303
  %v305 = vsel %vm304, %v296, %v301
  %v306 = vmul.f32 %v65, %v155
  %v307 = vmul.f32 %v66, %v165
  %v308 = vmul.f32 %v67, %v175
  %v309 = vmul.f32 %v68, %v185
  %v310 = vmul.f32 %v69, %v195
  %v311 = vmul.f32 %v70, %v205
  %v312 = vmul.f32 %v71, %v215
  %v313 = vmul.f32 %v72, %v225
  %v314 = vmul.f32 %v73, %v235
  %v315 = vmul.f32 %v74, %v245
  %v316 = vmul.f32 %v75, %v255
  %v317 = vmul.f32 %v76, %v265
  %v318 = vmul.f32 %v77, %v275
  %v319 = vmul.f32 %v78, %v285
  %v320 = vmul.f32 %v79, %v295
  %v321 = vmul.f32 %v80, %v305
  %v322 = vsub.f32 %v17, %v49
  %v323 = vsub.f32 %v18, %v50
  %v324 = vsub.f32 %v19, %v51
  %v325 = vsub.f32 %v20, %v52
  %v326 = vsub.f32 %v21, %v53
  %v327 = vsub.f32 %v22, %v54
  %v328 = vsub.f32 %v23, %v55
  %v329 = vsub.f32 %v24, %v56
  %v330 = vsub.f32 %v25, %v57
  %v331 = vsub.f32 %v26, %v58
  %v332 = vsub.f32 %v27, %v59
  %v333 = vsub.f32 %v28, %v60
  %v334 = vsub.f32 %v29, %v61
  %v335 = vsub.f32 %v30, %v62
  %v336 = vsub.f32 %v31, %v63
  %v337 = vsub.f32 %v32, %v64
  %v338 = vmul.f32 %v322, %v306
  %v339 = vmul.f32 %v323, %v307
  %v340 = vmul.f32 %v324, %v308
  %v341 = vmul.f32 %v325, %v309
  %v342 = vmul.f32 %v326, %v310
  %v343 = vmul.f32 %v327, %v311
  %v344 = vmul.f32 %v328, %v312
  %v345 = vmul.f32 %v329, %v313
  %v346 = vmul.f32 %v330, %v314
  %v347 = vmul.f32 %v331, %v315
  %v348 = vmul.f32 %v332, %v316
  %v349 = vmul.f32 %v333, %v317
  %v350 = vmul.f32 %v334, %v318
  %v351 = vmul.f32 %v335, %v319
  %v352 = vmul.f32 %v336, %v320
  %v353 = vmul.f32 %v337, %v321
  %v354 = vsel %vm97, %v338, 0.0
  %355 = vadd.xlane.f32.xlu0 %v354
  %v356 = vpop.xlane.xlu0 %355
  %v357 = vsel %vm97, %v339, 0.0
  %358 = vadd.xlane.f32.xlu0 %v357
  %v359 = vpop.xlane.xlu0 %358
  %v360 = vsel %vm97, %v340, 0.0
  %361 = vadd.xlane.f32.xlu0 %v360
  %v362 = vpop.xlane.xlu0 %361
  %v363 = vsel %vm97, %v341, 0.0
  %364 = vadd.xlane.f32.xlu0 %v363
  %v365 = vpop.xlane.xlu0 %364
  %v366 = vsel %vm97, %v342, 0.0
  %367 = vadd.xlane.f32.xlu0 %v366
  %v368 = vpop.xlane.xlu0 %367
  %v369 = vsel %vm97, %v343, 0.0
  %370 = vadd.xlane.f32.xlu0 %v369
  %v371 = vpop.xlane.xlu0 %370
  %v372 = vsel %vm97, %v344, 0.0
  %373 = vadd.xlane.f32.xlu0 %v372
  %v374 = vpop.xlane.xlu0 %373
  %v375 = vsel %vm97, %v345, 0.0
  %376 = vadd.xlane.f32.xlu0 %v375
  %v377 = vpop.xlane.xlu0 %376
  %v378 = vsel %vm97, %v346, 0.0
  %379 = vadd.xlane.f32.xlu0 %v378
  %v380 = vpop.xlane.xlu0 %379
  %v381 = vsel %vm97, %v347, 0.0
  %382 = vadd.xlane.f32.xlu0 %v381
  %v383 = vpop.xlane.xlu0 %382
  %v384 = vsel %vm97, %v348, 0.0
  %385 = vadd.xlane.f32.xlu0 %v384
  %v386 = vpop.xlane.xlu0 %385
  %v387 = vsel %vm97, %v349, 0.0
  %388 = vadd.xlane.f32.xlu0 %v387
  %v389 = vpop.xlane.xlu0 %388
  %v390 = vsel %vm97, %v350, 0.0
  %391 = vadd.xlane.f32.xlu0 %v390
  %v392 = vpop.xlane.xlu0 %391
  %v393 = vsel %vm97, %v351, 0.0
  %394 = vadd.xlane.f32.xlu0 %v393
  %v395 = vpop.xlane.xlu0 %394
  %v396 = vsel %vm97, %v352, 0.0
  %397 = vadd.xlane.f32.xlu0 %v396
  %v398 = vpop.xlane.xlu0 %397
  %v399 = vsel %vm97, %v353, 0.0
  %400 = vadd.xlane.f32.xlu0 %v399
  %v401 = vpop.xlane.xlu0 %400
  %v402 = vmul.f32 %v356, %v306
  %v403 = vmul.f32 %v359, %v307
  %v404 = vmul.f32 %v362, %v308
  %v405 = vmul.f32 %v365, %v309
  %v406 = vmul.f32 %v368, %v310
  %v407 = vmul.f32 %v371, %v311
  %v408 = vmul.f32 %v374, %v312
  %v409 = vmul.f32 %v377, %v313
  %v410 = vmul.f32 %v380, %v314
  %v411 = vmul.f32 %v383, %v315
  %v412 = vmul.f32 %v386, %v316
  %v413 = vmul.f32 %v389, %v317
  %v414 = vmul.f32 %v392, %v318
  %v415 = vmul.f32 %v395, %v319
  %v416 = vmul.f32 %v398, %v320
  %v417 = vmul.f32 %v401, %v321
  %v418 = vsub.f32 %v322, %v402
  %v419 = vsub.f32 %v323, %v403
  %v420 = vsub.f32 %v324, %v404
  %v421 = vsub.f32 %v325, %v405
  %v422 = vsub.f32 %v326, %v406
  %v423 = vsub.f32 %v327, %v407
  %v424 = vsub.f32 %v328, %v408
  %v425 = vsub.f32 %v329, %v409
  %v426 = vsub.f32 %v330, %v410
  %v427 = vsub.f32 %v331, %v411
  %v428 = vsub.f32 %v332, %v412
  %v429 = vsub.f32 %v333, %v413
  %v430 = vsub.f32 %v334, %v414
  %v431 = vsub.f32 %v335, %v415
  %v432 = vsub.f32 %v336, %v416
  %v433 = vsub.f32 %v337, %v417
  %v434 = vadd.f32 %v418, %v33
  %v435 = vadd.f32 %v419, %v34
  %v436 = vadd.f32 %v420, %v35
  %v437 = vadd.f32 %v421, %v36
  %v438 = vadd.f32 %v422, %v37
  %v439 = vadd.f32 %v423, %v38
  %v440 = vadd.f32 %v424, %v39
  %v441 = vadd.f32 %v425, %v40
  %v442 = vadd.f32 %v426, %v41
  %v443 = vadd.f32 %v427, %v42
  %v444 = vadd.f32 %v428, %v43
  %v445 = vadd.f32 %v429, %v44
  %v446 = vadd.f32 %v430, %v45
  %v447 = vadd.f32 %v431, %v46
  %v448 = vadd.f32 %v432, %v47
  %v449 = vadd.f32 %v433, %v48
  %v450 = vmul.f32 %v434, %v434
  %v451 = vmul.f32 %v435, %v435
  %v452 = vmul.f32 %v436, %v436
  %v453 = vmul.f32 %v437, %v437
  %v454 = vmul.f32 %v438, %v438
  %v455 = vmul.f32 %v439, %v439
  %v456 = vmul.f32 %v440, %v440
  %v457 = vmul.f32 %v441, %v441
  %v458 = vmul.f32 %v442, %v442
  %v459 = vmul.f32 %v443, %v443
  %v460 = vmul.f32 %v444, %v444
  %v461 = vmul.f32 %v445, %v445
  %v462 = vmul.f32 %v446, %v446
  %v463 = vmul.f32 %v447, %v447
  %v464 = vmul.f32 %v448, %v448
  %v465 = vmul.f32 %v449, %v449
  %v466 = vsel %vm97, %v450, 0.0
  %467 = vadd.xlane.f32.xlu0 %v466
  %v468 = vpop.xlane.xlu0 %467
  %v469 = vsel %vm97, %v451, 0.0
  %470 = vadd.xlane.f32.xlu0 %v469
  %v471 = vpop.xlane.xlu0 %470
  %v472 = vsel %vm97, %v452, 0.0
  %473 = vadd.xlane.f32.xlu0 %v472
  %v474 = vpop.xlane.xlu0 %473
  %v475 = vsel %vm97, %v453, 0.0
  %476 = vadd.xlane.f32.xlu0 %v475
  %v477 = vpop.xlane.xlu0 %476
  %v478 = vsel %vm97, %v454, 0.0
  %479 = vadd.xlane.f32.xlu0 %v478
  %v480 = vpop.xlane.xlu0 %479
  %v481 = vsel %vm97, %v455, 0.0
  %482 = vadd.xlane.f32.xlu0 %v481
  %v483 = vpop.xlane.xlu0 %482
  %v484 = vsel %vm97, %v456, 0.0
  %485 = vadd.xlane.f32.xlu0 %v484
  %v486 = vpop.xlane.xlu0 %485
  %v487 = vsel %vm97, %v457, 0.0
  %488 = vadd.xlane.f32.xlu0 %v487
  %v489 = vpop.xlane.xlu0 %488
  %v490 = vsel %vm97, %v458, 0.0
  %491 = vadd.xlane.f32.xlu0 %v490
  %v492 = vpop.xlane.xlu0 %491
  %v493 = vsel %vm97, %v459, 0.0
  %494 = vadd.xlane.f32.xlu0 %v493
  %v495 = vpop.xlane.xlu0 %494
  %v496 = vsel %vm97, %v460, 0.0
  %497 = vadd.xlane.f32.xlu0 %v496
  %v498 = vpop.xlane.xlu0 %497
  %v499 = vsel %vm97, %v461, 0.0
  %500 = vadd.xlane.f32.xlu0 %v499
  %v501 = vpop.xlane.xlu0 %500
  %v502 = vsel %vm97, %v462, 0.0
  %503 = vadd.xlane.f32.xlu0 %v502
  %v504 = vpop.xlane.xlu0 %503
  %v505 = vsel %vm97, %v463, 0.0
  %506 = vadd.xlane.f32.xlu0 %v505
  %v507 = vpop.xlane.xlu0 %506
  %v508 = vsel %vm97, %v464, 0.0
  %509 = vadd.xlane.f32.xlu0 %v508
  %v510 = vpop.xlane.xlu0 %509
  %v511 = vsel %vm97, %v465, 0.0
  %512 = vadd.xlane.f32.xlu0 %v511
  %v513 = vpop.xlane.xlu0 %512
  %v514 = vrsqrt.pop %v468
  %v515 = vmul.f32 %v514, %v468
  %v516 = vmul.f32 %v515, %v514
  %v517 = vmul.f32 0.5, %v516
  %v518 = vsub.f32 1.5, %v517
  %v519 = vmul.f32 %v514, %v518
  %v520 = vmul.f32 %v468, %v519
  %vm521 = vcmp.eq.f32.partialorder %v468, inf
  %v522 = vsel %vm521, %v468, %v520
  %vm523 = vcmp.eq.f32.partialorder %v468, 0.0
  %v524 = vand.u32 %v468, 2147483648
  %v525 = vsel %vm523, %v524, %v522
  %v526 = vrsqrt.pop %v471
  %v527 = vmul.f32 %v526, %v471
  %v528 = vmul.f32 %v527, %v526
  %v529 = vmul.f32 0.5, %v528
  %v530 = vsub.f32 1.5, %v529
  %v531 = vmul.f32 %v526, %v530
  %v532 = vmul.f32 %v471, %v531
  %vm533 = vcmp.eq.f32.partialorder %v471, inf
  %v534 = vsel %vm533, %v471, %v532
  %vm535 = vcmp.eq.f32.partialorder %v471, 0.0
  %v536 = vand.u32 %v471, 2147483648
  %v537 = vsel %vm535, %v536, %v534
  %v538 = vrsqrt.pop %v474
  %v539 = vmul.f32 %v538, %v474
  %v540 = vmul.f32 %v539, %v538
  %v541 = vmul.f32 0.5, %v540
  %v542 = vsub.f32 1.5, %v541
  %v543 = vmul.f32 %v538, %v542
  %v544 = vmul.f32 %v474, %v543
  %vm545 = vcmp.eq.f32.partialorder %v474, inf
  %v546 = vsel %vm545, %v474, %v544
  %vm547 = vcmp.eq.f32.partialorder %v474, 0.0
  %v548 = vand.u32 %v474, 2147483648
  %v549 = vsel %vm547, %v548, %v546
  %v550 = vrsqrt.pop %v477
  %v551 = vmul.f32 %v550, %v477
  %v552 = vmul.f32 %v551, %v550
  %v553 = vmul.f32 0.5, %v552
  %v554 = vsub.f32 1.5, %v553
  %v555 = vmul.f32 %v550, %v554
  %v556 = vmul.f32 %v477, %v555
  %vm557 = vcmp.eq.f32.partialorder %v477, inf
  %v558 = vsel %vm557, %v477, %v556
  %vm559 = vcmp.eq.f32.partialorder %v477, 0.0
  %v560 = vand.u32 %v477, 2147483648
  %v561 = vsel %vm559, %v560, %v558
  %v562 = vrsqrt.pop %v480
  %v563 = vmul.f32 %v562, %v480
  %v564 = vmul.f32 %v563, %v562
  %v565 = vmul.f32 0.5, %v564
  %v566 = vsub.f32 1.5, %v565
  %v567 = vmul.f32 %v562, %v566
  %v568 = vmul.f32 %v480, %v567
  %vm569 = vcmp.eq.f32.partialorder %v480, inf
  %v570 = vsel %vm569, %v480, %v568
  %vm571 = vcmp.eq.f32.partialorder %v480, 0.0
  %v572 = vand.u32 %v480, 2147483648
  %v573 = vsel %vm571, %v572, %v570
  %v574 = vrsqrt.pop %v483
  %v575 = vmul.f32 %v574, %v483
  %v576 = vmul.f32 %v575, %v574
  %v577 = vmul.f32 0.5, %v576
  %v578 = vsub.f32 1.5, %v577
  %v579 = vmul.f32 %v574, %v578
  %v580 = vmul.f32 %v483, %v579
  %vm581 = vcmp.eq.f32.partialorder %v483, inf
  %v582 = vsel %vm581, %v483, %v580
  %vm583 = vcmp.eq.f32.partialorder %v483, 0.0
  %v584 = vand.u32 %v483, 2147483648
  %v585 = vsel %vm583, %v584, %v582
  %v586 = vrsqrt.pop %v486
  %v587 = vmul.f32 %v586, %v486
  %v588 = vmul.f32 %v587, %v586
  %v589 = vmul.f32 0.5, %v588
  %v590 = vsub.f32 1.5, %v589
  %v591 = vmul.f32 %v586, %v590
  %v592 = vmul.f32 %v486, %v591
  %vm593 = vcmp.eq.f32.partialorder %v486, inf
  %v594 = vsel %vm593, %v486, %v592
  %vm595 = vcmp.eq.f32.partialorder %v486, 0.0
  %v596 = vand.u32 %v486, 2147483648
  %v597 = vsel %vm595, %v596, %v594
  %v598 = vrsqrt.pop %v489
  %v599 = vmul.f32 %v598, %v489
  %v600 = vmul.f32 %v599, %v598
  %v601 = vmul.f32 0.5, %v600
  %v602 = vsub.f32 1.5, %v601
  %v603 = vmul.f32 %v598, %v602
  %v604 = vmul.f32 %v489, %v603
  %vm605 = vcmp.eq.f32.partialorder %v489, inf
  %v606 = vsel %vm605, %v489, %v604
  %vm607 = vcmp.eq.f32.partialorder %v489, 0.0
  %v608 = vand.u32 %v489, 2147483648
  %v609 = vsel %vm607, %v608, %v606
  %v610 = vrsqrt.pop %v492
  %v611 = vmul.f32 %v610, %v492
  %v612 = vmul.f32 %v611, %v610
  %v613 = vmul.f32 0.5, %v612
  %v614 = vsub.f32 1.5, %v613
  %v615 = vmul.f32 %v610, %v614
  %v616 = vmul.f32 %v492, %v615
  %vm617 = vcmp.eq.f32.partialorder %v492, inf
  %v618 = vsel %vm617, %v492, %v616
  %vm619 = vcmp.eq.f32.partialorder %v492, 0.0
  %v620 = vand.u32 %v492, 2147483648
  %v621 = vsel %vm619, %v620, %v618
  %v622 = vrsqrt.pop %v495
  %v623 = vmul.f32 %v622, %v495
  %v624 = vmul.f32 %v623, %v622
  %v625 = vmul.f32 0.5, %v624
  %v626 = vsub.f32 1.5, %v625
  %v627 = vmul.f32 %v622, %v626
  %v628 = vmul.f32 %v495, %v627
  %vm629 = vcmp.eq.f32.partialorder %v495, inf
  %v630 = vsel %vm629, %v495, %v628
  %vm631 = vcmp.eq.f32.partialorder %v495, 0.0
  %v632 = vand.u32 %v495, 2147483648
  %v633 = vsel %vm631, %v632, %v630
  %v634 = vrsqrt.pop %v498
  %v635 = vmul.f32 %v634, %v498
  %v636 = vmul.f32 %v635, %v634
  %v637 = vmul.f32 0.5, %v636
  %v638 = vsub.f32 1.5, %v637
  %v639 = vmul.f32 %v634, %v638
  %v640 = vmul.f32 %v498, %v639
  %vm641 = vcmp.eq.f32.partialorder %v498, inf
  %v642 = vsel %vm641, %v498, %v640
  %vm643 = vcmp.eq.f32.partialorder %v498, 0.0
  %v644 = vand.u32 %v498, 2147483648
  %v645 = vsel %vm643, %v644, %v642
  %v646 = vrsqrt.pop %v501
  %v647 = vmul.f32 %v646, %v501
  %v648 = vmul.f32 %v647, %v646
  %v649 = vmul.f32 0.5, %v648
  %v650 = vsub.f32 1.5, %v649
  %v651 = vmul.f32 %v646, %v650
  %v652 = vmul.f32 %v501, %v651
  %vm653 = vcmp.eq.f32.partialorder %v501, inf
  %v654 = vsel %vm653, %v501, %v652
  %vm655 = vcmp.eq.f32.partialorder %v501, 0.0
  %v656 = vand.u32 %v501, 2147483648
  %v657 = vsel %vm655, %v656, %v654
  %v658 = vrsqrt.pop %v504
  %v659 = vmul.f32 %v658, %v504
  %v660 = vmul.f32 %v659, %v658
  %v661 = vmul.f32 0.5, %v660
  %v662 = vsub.f32 1.5, %v661
  %v663 = vmul.f32 %v658, %v662
  %v664 = vmul.f32 %v504, %v663
  %vm665 = vcmp.eq.f32.partialorder %v504, inf
  %v666 = vsel %vm665, %v504, %v664
  %vm667 = vcmp.eq.f32.partialorder %v504, 0.0
  %v668 = vand.u32 %v504, 2147483648
  %v669 = vsel %vm667, %v668, %v666
  %v670 = vrsqrt.pop %v507
  %v671 = vmul.f32 %v670, %v507
  %v672 = vmul.f32 %v671, %v670
  %v673 = vmul.f32 0.5, %v672
  %v674 = vsub.f32 1.5, %v673
  %v675 = vmul.f32 %v670, %v674
  %v676 = vmul.f32 %v507, %v675
  %vm677 = vcmp.eq.f32.partialorder %v507, inf
  %v678 = vsel %vm677, %v507, %v676
  %vm679 = vcmp.eq.f32.partialorder %v507, 0.0
  %v680 = vand.u32 %v507, 2147483648
  %v681 = vsel %vm679, %v680, %v678
  %v682 = vrsqrt.pop %v510
  %v683 = vmul.f32 %v682, %v510
  %v684 = vmul.f32 %v683, %v682
  %v685 = vmul.f32 0.5, %v684
  %v686 = vsub.f32 1.5, %v685
  %v687 = vmul.f32 %v682, %v686
  %v688 = vmul.f32 %v510, %v687
  %vm689 = vcmp.eq.f32.partialorder %v510, inf
  %v690 = vsel %vm689, %v510, %v688
  %vm691 = vcmp.eq.f32.partialorder %v510, 0.0
  %v692 = vand.u32 %v510, 2147483648
  %v693 = vsel %vm691, %v692, %v690
  %v694 = vrsqrt.pop %v513
  %v695 = vmul.f32 %v694, %v513
  %v696 = vmul.f32 %v695, %v694
  %v697 = vmul.f32 0.5, %v696
  %v698 = vsub.f32 1.5, %v697
  %v699 = vmul.f32 %v694, %v698
  %v700 = vmul.f32 %v513, %v699
  %vm701 = vcmp.eq.f32.partialorder %v513, inf
  %v702 = vsel %vm701, %v513, %v700
  %vm703 = vcmp.eq.f32.partialorder %v513, 0.0
  %v704 = vand.u32 %v513, 2147483648
  %v705 = vsel %vm703, %v704, %v702
  %vm706 = vcmask 7168
  %707 = vst.msk [vmem:[%s4] sm:$0xff] %vm706, %v525
  %708 = vst.msk [vmem:[%s4 + $0x8] sm:$0xff] %vm706, %v537
  %709 = vst.msk [vmem:[%s4 + $0x10] sm:$0xff] %vm706, %v549
  %710 = vst.msk [vmem:[%s4 + $0x18] sm:$0xff] %vm706, %v561
  %711 = vst.msk [vmem:[%s4 + $0x20] sm:$0xff] %vm706, %v573
  %712 = vst.msk [vmem:[%s4 + $0x28] sm:$0xff] %vm706, %v585
  %713 = vst.msk [vmem:[%s4 + $0x30] sm:$0xff] %vm706, %v597
  %714 = vst.msk [vmem:[%s4 + $0x38] sm:$0xff] %vm706, %v609
  %715 = vst.msk [vmem:[%s4 + $0x40] sm:$0xff] %vm706, %v621
  %716 = vst.msk [vmem:[%s4 + $0x48] sm:$0xff] %vm706, %v633
  %717 = vst.msk [vmem:[%s4 + $0x50] sm:$0xff] %vm706, %v645
  %718 = vst.msk [vmem:[%s4 + $0x58] sm:$0xff] %vm706, %v657
  %719 = vst.msk [vmem:[%s4 + $0x60] sm:$0xff] %vm706, %v669
  %720 = vst.msk [vmem:[%s4 + $0x68] sm:$0xff] %vm706, %v681
  %721 = vst.msk [vmem:[%s4 + $0x70] sm:$0xff] %vm706, %v693
  %722 = vst.msk [vmem:[%s4 + $0x78] sm:$0xff] %vm706, %v705
  // Predicated region
  $region18: #{tpu_custom_call.1} parent=0 // pred_check
    _
  $region19: #{tpu_custom_call.1} parent=0 // pred_check_branch
    %724 = sbr.rel (0) target = $region21
  $region20: #{tpu_custom_call.1} parent=0 // pred_region
    _
  $region21: #{tpu_custom_call.1} parent=0 // pred_fallthru
    _
  // Predicated region
  $region22: #{tpu_custom_call.1} parent=0 // pred_check
    _
  $region23: #{tpu_custom_call.1} parent=0 // pred_check_branch
    %726 = sbr.rel (0) target = $region25
  $region24: #{tpu_custom_call.1} parent=0 // pred_region
    _
  $region25: #{tpu_custom_call.1} parent=0 // pred_fallthru
    _

</llo_original>
